<compile_context>
chip_gen: v7x
topology: tpu7x:2x2x1
jax: 0.10.0
libtpu: 0.0.40
codegen_flags: <defaults>
</compile_context>

<pallas_src>
import functools

import jax
import jax.numpy as jnp
from jax.experimental import pallas as pl
from jax.experimental.pallas import tpu as pltpu


def _round_up(x, m):
    return (x + m - 1) // m * m


# --------------------------- Pallas recurrence kernel ------------------------
def _gru_dir_chunk_kernel(gx_ref, h0_ref, whh_ref, bhn_ref, out_ref, h_ref,
                          *, s_valid, t_chunk, unroll):
    """One (direction, time-chunk) grid step of the bidirectional GRU.

    Grid = (2, num_chunks); axis 0 (direction) is 'parallel', axis 1 (chunk)
    is the sequential recurrence ('arbitrary').

    gx_ref : (1, T, B, 3H) bf16  x @ W_ih^T + folded biases for this
             direction's chunk (backward dir gets chunk nc-1-c via the
             index_map and walks it in reverse inside the kernel).
    h0_ref : (1, B, H)  f32   initial hidden state of this direction.
    whh_ref: (1, H, 3H) bf16  packed recurrent weights (columns r | z | n).
    bhn_ref: (1, 1, H)  f32   hidden bias of the n gate (stays inside r*(...)).
    out_ref: (1, B, H)  f32   resident accumulator: sum_t h_t, this direction.
    h_ref  : (2, B, H)  f32   scratch hidden state, slot = direction.
    """
    d = pl.program_id(0)          # direction: 0 = forward, 1 = backward
    c = pl.program_id(1)          # chunk index
    nc = pl.num_programs(1)
    T = t_chunk
    H = h_ref.shape[-1]

    @pl.when(c == 0)
    def _():
        h_ref[d] = h0_ref[0]
        out_ref[...] = jnp.zeros_like(out_ref)

    whh = whh_ref[0]              # (H, 3H) bf16, loop-invariant across chunk
    bhn = bhn_ref[0]              # (1, H)  f32

    needs_mask = s_valid is not None

    def gru_step(gx, h):
        # bf16 x bf16 MXU matmul, f32 accumulation; gate math in f32.
        gh = jnp.dot(h.astype(jnp.bfloat16), whh,
                     preferred_element_type=jnp.float32)          # (B, 3H)
        gx = gx.astype(jnp.float32)
        r = jax.nn.sigmoid(gx[:, :H] + gh[:, :H])
        z = jax.nn.sigmoid(gx[:, H:2 * H] + gh[:, H:2 * H])
        n = jnp.tanh(gx[:, 2 * H:] + r * (gh[:, 2 * H:] + bhn))
        return (1.0 - z) * n + z * h

    def body(j, carry):
        h, acc = carry
        # forward walks the chunk left->right, backward right->left.
        t_loc = (1 - d) * j + d * (T - 1 - j)
        h_new = gru_step(gx_ref[0, t_loc], h)
        if needs_mask:
            c_data = (1 - d) * c + d * (nc - 1 - c)     # data chunk index
            valid = (c_data * T + t_loc) < s_valid
            h_new = jnp.where(valid, h_new, h)
            acc = acc + jnp.where(valid, h_new, 0.0)
        else:
            acc = acc + h_new
        return h_new, acc

    h_init = h_ref[d]
    acc_init = jnp.zeros_like(h_init)
    h, acc = jax.lax.fori_loop(0, T, body, (h_init, acc_init), unroll=unroll)

    h_ref[d] = h
    out_ref[0] += acc


def _pick_chunk(S, B, G3, *, vmem_budget=8 << 20, max_chunk=256):
    """Largest chunk whose double-buffered bf16 gx block fits the budget."""
    bytes_per_step = B * G3 * 2                   # bf16
    t = vmem_budget // (2 * bytes_per_step)       # double-buffered input chunk
    return int(max(1, min(S, max_chunk, t)))


def _bigru_sum(gx2, h02, whh2, bhn2, *, t_chunk, s_valid):
    """gx2: (2, S_pad, B, 3H) bf16 -> (2, B, H) f32 per-direction time-sums."""
    _, S_pad, B, G3 = gx2.shape
    H = G3 // 3
    nc = S_pad // t_chunk
    unroll = min(t_chunk, 8)
    mask_s = None if s_valid == S_pad else s_valid

    kernel = functools.partial(_gru_dir_chunk_kernel,
                               s_valid=mask_s, t_chunk=t_chunk, unroll=unroll)

    def const(shp):
        return pl.BlockSpec((1,) + shp, lambda d, c: (d,) + (0,) * len(shp))

    return pl.pallas_call(
        kernel,
        out_shape=jax.ShapeDtypeStruct((2, B, H), jnp.float32),
        grid_spec=pltpu.PrefetchScalarGridSpec(
            num_scalar_prefetch=0,
            grid=(2, nc),
            in_specs=[
                # per-direction gate-activation chunk (backward dir reversed)
                pl.BlockSpec(
                    (1, t_chunk, B, G3),
                    lambda d, c: (d, (1 - d) * c + d * (nc - 1 - c), 0, 0)),
                const((B, H)),      # h0
                const((H, G3)),     # packed W_hh (bf16)
                const((1, H)),      # n-gate hidden bias
            ],
            out_specs=pl.BlockSpec((1, B, H), lambda d, c: (d, 0, 0)),
            scratch_shapes=[pltpu.VMEM((2, B, H), jnp.float32)],
        ),
        compiler_params=pltpu.CompilerParams(
            dimension_semantics=("parallel", "arbitrary"),
            vmem_limit_bytes=32 * 1024 * 1024,
        ),
    )(gx2, h02, whh2, bhn2)


# ----------------------------- wrapper / glue ---------------------------------
def _input_proj(emb, wih, bih, bhh):
    """All-timestep input projection (one big matmul), time-major output.

    emb: (B, S, D);  wih: (3H, D) PyTorch layout (rows r|z|n).
    Returns gx (S, B, 3H) = x @ W_i^T + folded biases, plus the n-gate hidden
    bias (H,) which cannot be folded (it lives inside r * (...)).
    """
    b_ir, b_iz, b_in = jnp.split(bih, 3)
    b_hr, b_hz, b_hn = jnp.split(bhh, 3)
    bias_x = jnp.concatenate([b_ir + b_hr, b_iz + b_hz, b_in])     # (3H,)
    gx = jnp.einsum('bsd,gd->sbg', emb, wih) + bias_x              # (S, B, 3H)
    return gx, b_hn


def gru_encoder_forward(ed, params, *, vmem_budget=8 << 20, max_chunk=256):
    """ed: (B, S) int32 token ids -> (B, embed_dim) float32."""
    emb = params["embedding"][ed]              # gather (plain JAX glue)
    B, S, D = emb.shape
    H = params["h0"].shape[-1]
    G3 = 3 * H

    gx_f, bhn_f = _input_proj(emb, params["wih_f"], params["bih_f"], params["bhh_f"])
    gx_b, bhn_b = _input_proj(emb, params["wih_b"], params["bih_b"], params["bhh_b"])
    gx2 = jnp.stack([gx_f, gx_b]).astype(jnp.bfloat16)             # (2, S, B, 3H)

    # Pad batch to a sublane multiple and sequence to a chunk multiple.
    B_pad = max(8, _round_up(B, 8))
    t_chunk = _pick_chunk(S, B_pad, G3, vmem_budget=vmem_budget, max_chunk=max_chunk)
    S_pad = _round_up(S, t_chunk)
    gx2 = jnp.pad(gx2, ((0, 0), (0, S_pad - S), (0, B_pad - B), (0, 0)))

    whh2 = jnp.stack([params["whh_f"].T, params["whh_b"].T]).astype(jnp.bfloat16)
    bhn2 = jnp.stack([bhn_f.reshape(1, H), bhn_b.reshape(1, H)])   # (2, 1, H)
    h02 = jnp.broadcast_to(params["h0"], (2, B_pad, H)).astype(jnp.float32)

    out2 = _bigru_sum(gx2, h02, whh2, bhn2, t_chunk=t_chunk, s_valid=S)  # (2,B_pad,H)
    # [fwd ; bwd] lane concat + drop batch padding (cheap XLA glue).
    return jnp.transpose(out2, (1, 0, 2)).reshape(B_pad, 2 * H)[:B]


# ---------------- pure-JAX reference (for correctness check only) -------------
def _gru_dir_ref(x_tbd, h0, wih, whh, bih, bhh):
    wir, wiz, win = jnp.split(wih, 3, axis=0)
    whr, whz, whn = jnp.split(whh, 3, axis=0)
    bir, biz, bin_ = jnp.split(bih, 3)
    bhr, bhz, bhn = jnp.split(bhh, 3)

    def step(h, x):
        r = jax.nn.sigmoid(x @ wir.T + bir + h @ whr.T + bhr)
        z = jax.nn.sigmoid(x @ wiz.T + biz + h @ whz.T + bhz)
        n = jnp.tanh(x @ win.T + bin_ + r * (h @ whn.T + bhn))
        h_new = (1.0 - z) * n + z * h
        return h_new, h_new

    _, hs = jax.lax.scan(step, h0, x_tbd)
    return hs.sum(axis=0)


def gru_encoder_ref(ed, params):
    emb = params["embedding"][ed]
    x = jnp.transpose(emb, (1, 0, 2))
    B = ed.shape[0]
    H = params["h0"].shape[-1]
    h0f = jnp.broadcast_to(params["h0"][0], (B, H))
    h0b = jnp.broadcast_to(params["h0"][1], (B, H))
    of = _gru_dir_ref(x, h0f, params["wih_f"], params["whh_f"],
                      params["bih_f"], params["bhh_f"])
    ob = _gru_dir_ref(x[::-1], h0b, params["wih_b"], params["whh_b"],
                      params["bih_b"], params["bhh_b"])
    return jnp.concatenate([of, ob], axis=-1)


# ---------------- deterministic parameter init ---------------------------------
def init_params(key, embed_dim, n_word, bound):
    H = embed_dim // 2
    ks = jax.random.split(key, 10)
    u = lambda k, shp, b: jax.random.uniform(k, shp, jnp.float32, -b, b)
    s = 1.0 / float(jnp.sqrt(H))   # nn.GRU default init range
    return {
        # module replaces the embedding weight wholesale (padding row not zeroed)
        "embedding": u(ks[0], (n_word + 1, embed_dim), bound),
        "h0": u(ks[1], (2, 1, H), bound),
        "wih_f": u(ks[2], (3 * H, embed_dim), s),
        "whh_f": u(ks[3], (3 * H, H), s),
        "bih_f": u(ks[4], (3 * H,), s),
        "bhh_f": u(ks[5], (3 * H,), s),
        "wih_b": u(ks[6], (3 * H, embed_dim), s),
        "whh_b": u(ks[7], (3 * H, H), s),
        "bih_b": u(ks[8], (3 * H,), s),
        "bhh_b": u(ks[9], (3 * H,), s),
    }


if __name__ == "__main__":
    embed_dim, n_word, bound = 32, 50, 0.1
    B, S = 2, 10

    key = jax.random.PRNGKey(0)
    kp, kd = jax.random.split(key)
    params = init_params(kp, embed_dim, n_word, bound)
    ed = jax.random.randint(kd, (B, S), 0, n_word + 1, dtype=jnp.int32)

    # max_chunk=4 exercises chunked recurrence (nc=3), S padding + masking,
    # and batch padding (B=2 -> 8) at toy sizes.
    out = gru_encoder_forward(ed, params, max_chunk=4)
    out = jax.block_until_ready(out)

    ref = gru_encoder_ref(ed, params)
    assert out.shape == (B, embed_dim), out.shape
    # bf16 streams -> looser tolerance than the old all-f32 path.
    assert jnp.allclose(out, ref, atol=2e-2, rtol=2e-2), float(
        jnp.max(jnp.abs(out - ref)))
    print("KERNEL_OK")
</pallas_src>

<mosaic_0001>
module attributes {stable_mosaic.version = 11 : i64} {
  func.func @_gru_dir_chunk_kernel(%arg0: i32, %arg1: i32, %arg2: memref<1x4x8x48xbf16, #tpu.memory_space<vmem>>, %arg3: memref<1x8x16xf32, #tpu.memory_space<vmem>>, %arg4: memref<1x16x48xbf16, #tpu.memory_space<vmem>>, %arg5: memref<1x1x16xf32, #tpu.memory_space<vmem>>, %arg6: memref<1x8x16xf32, #tpu.memory_space<vmem>>, %arg7: memref<2x8x16xf32, #tpu.memory_space<vmem>>) attributes {dimension_semantics = [#tpu.dimension_semantics<parallel>, #tpu.dimension_semantics<arbitrary>], iteration_bounds = array<i64: 2, 3>, scalar_prefetch = 0 : i64, scratch_operands = 1 : i64, tpu.core_type = #tpu.core_type<tc>, window_params = [{transform_indices = @transform_0, window_bounds = array<i64: 1, 4, 8, 48>}, {transform_indices = @transform_1, window_bounds = array<i64: 1, 8, 16>}, {transform_indices = @transform_2, window_bounds = array<i64: 1, 16, 48>}, {transform_indices = @transform_3, window_bounds = array<i64: 1, 1, 16>}, {transform_indices = @transform_4, window_bounds = array<i64: 1, 8, 16>}]} {
    %c0_i32 = arith.constant 0 : i32
    %0 = arith.cmpi eq, %arg1, %c0_i32 : i32
    %1 = arith.extui %0 : i1 to i32
    %c0_i32_0 = arith.constant 0 : i32
    %2 = arith.cmpi ne, %1, %c0_i32_0 : i32
    scf.if %2 {
      %c0_72 = arith.constant 0 : index
      %c0_73 = arith.constant 0 : index
      %c0_74 = arith.constant 0 : index
      %225 = vector.load %arg3[%c0_72, %c0_73, %c0_74] : memref<1x8x16xf32, #tpu.memory_space<vmem>>, vector<1x8x16xf32>
      %226 = vector.shape_cast %225 : vector<1x8x16xf32> to vector<8x16xf32>
      %227 = arith.index_cast %arg0 : i32 to index
      %c0_75 = arith.constant 0 : index
      %c0_76 = arith.constant 0 : index
      %228 = vector.load %arg7[%227, %c0_75, %c0_76] : memref<2x8x16xf32, #tpu.memory_space<vmem>>, vector<1x8x16xf32>
      %229 = vector.shape_cast %228 : vector<1x8x16xf32> to vector<8x16xf32>
      %230 = vector.shape_cast %226 : vector<8x16xf32> to vector<1x8x16xf32>
      tpu.vector_store %arg7[%227, %c0_75, %c0_76], %230 {strides = array<i32>} : memref<2x8x16xf32, #tpu.memory_space<vmem>>, vector<1x8x16xf32>,
      %cst_77 = arith.constant 0.000000e+00 : f32
      %231 = vector.broadcast %cst_77 : f32 to vector<1x8x16xf32>
      %c0_78 = arith.constant 0 : index
      %c0_79 = arith.constant 0 : index
      %c0_80 = arith.constant 0 : index
      %232 = vector.load %arg6[%c0_78, %c0_79, %c0_80] : memref<1x8x16xf32, #tpu.memory_space<vmem>>, vector<1x8x16xf32>
      tpu.vector_store %arg6[%c0_78, %c0_79, %c0_80], %231 {strides = array<i32>} : memref<1x8x16xf32, #tpu.memory_space<vmem>>, vector<1x8x16xf32>,
    } else {
    }
    %c0 = arith.constant 0 : index
    %c0_1 = arith.constant 0 : index
    %c0_2 = arith.constant 0 : index
    %3 = vector.load %arg4[%c0, %c0_1, %c0_2] : memref<1x16x48xbf16, #tpu.memory_space<vmem>>, vector<1x16x48xbf16>
    %4 = vector.shape_cast %3 : vector<1x16x48xbf16> to vector<16x48xbf16>
    %c0_3 = arith.constant 0 : index
    %c0_4 = arith.constant 0 : index
    %c0_5 = arith.constant 0 : index
    %5 = vector.load %arg5[%c0_3, %c0_4, %c0_5] : memref<1x1x16xf32, #tpu.memory_space<vmem>>, vector<1x1x16xf32>
    %6 = vector.shape_cast %5 : vector<1x1x16xf32> to vector<1x16xf32>
    %7 = arith.index_cast %arg0 : i32 to index
    %c0_6 = arith.constant 0 : index
    %c0_7 = arith.constant 0 : index
    %8 = vector.load %arg7[%7, %c0_6, %c0_7] : memref<2x8x16xf32, #tpu.memory_space<vmem>>, vector<1x8x16xf32>
    %9 = vector.shape_cast %8 : vector<1x8x16xf32> to vector<8x16xf32>
    %cst = arith.constant 0.000000e+00 : f32
    %10 = vector.broadcast %cst : f32 to vector<8x16xf32>
    %c0_i32_8 = arith.constant 0 : i32
    %c1_i32 = arith.constant 1 : i32
    %11 = arith.subi %c1_i32, %arg0 : i32
    %12 = arith.muli %11, %c0_i32_8 : i32
    %c3_i32 = arith.constant 3 : i32
    %13 = arith.subi %c3_i32, %c0_i32_8 : i32
    %14 = arith.muli %arg0, %13 : i32
    %15 = arith.addi %12, %14 : i32
    %c0_9 = arith.constant 0 : index
    %16 = arith.index_cast %15 : i32 to index
    %c0_10 = arith.constant 0 : index
    %c0_11 = arith.constant 0 : index
    %17 = vector.load %arg2[%c0_9, %16, %c0_10, %c0_11] : memref<1x4x8x48xbf16, #tpu.memory_space<vmem>>, vector<1x1x8x48xbf16>
    %18 = vector.shape_cast %17 : vector<1x1x8x48xbf16> to vector<8x48xbf16>
    %19 = arith.truncf %9 : vector<8x16xf32> to vector<8x16xbf16>
    %cst_12 = arith.constant dense<0.000000e+00> : vector<8x48xf32>
    %20 = tpu.matmul %19, %4, %cst_12 {dimension_numbers = #tpu.dot_dimension_numbers<[1], [0], [0], [1], [0, 0, 1, 1], [], []>} : vector<8x16xbf16>, vector<16x48xbf16>, vector<8x48xf32> -> vector<8x48xf32>
    %21 = arith.extf %18 : vector<8x48xbf16> to vector<8x48xf32>
    %22 = vector.extract_strided_slice %21 {offsets = [0, 0], sizes = [8, 16], strides = [1, 1]} : vector<8x48xf32> to vector<8x16xf32>
    %23 = vector.extract_strided_slice %20 {offsets = [0, 0], sizes = [8, 16], strides = [1, 1]} : vector<8x48xf32> to vector<8x16xf32>
    %24 = arith.addf %22, %23 : vector<8x16xf32>
    %25 = arith.negf %24 : vector<8x16xf32>
    %26 = math.exp %25 : vector<8x16xf32>
    %cst_13 = arith.constant 1.000000e+00 : f32
    %27 = vector.broadcast %cst_13 : f32 to vector<8x16xf32>
    %28 = arith.addf %27, %26 : vector<8x16xf32>
    %29 = arith.divf %27, %28 : vector<8x16xf32>
    %30 = vector.extract_strided_slice %21 {offsets = [0, 16], sizes = [8, 16], strides = [1, 1]} : vector<8x48xf32> to vector<8x16xf32>
    %31 = vector.extract_strided_slice %20 {offsets = [0, 16], sizes = [8, 16], strides = [1, 1]} : vector<8x48xf32> to vector<8x16xf32>
    %32 = arith.addf %30, %31 : vector<8x16xf32>
    %33 = arith.negf %32 : vector<8x16xf32>
    %34 = math.exp %33 : vector<8x16xf32>
    %cst_14 = arith.constant 1.000000e+00 : f32
    %35 = vector.broadcast %cst_14 : f32 to vector<8x16xf32>
    %36 = arith.addf %35, %34 : vector<8x16xf32>
    %37 = arith.divf %35, %36 : vector<8x16xf32>
    %38 = vector.extract_strided_slice %21 {offsets = [0, 32], sizes = [8, 16], strides = [1, 1]} : vector<8x48xf32> to vector<8x16xf32>
    %39 = vector.extract_strided_slice %20 {offsets = [0, 32], sizes = [8, 16], strides = [1, 1]} : vector<8x48xf32> to vector<8x16xf32>
    %40 = vector.broadcast %6 : vector<1x16xf32> to vector<8x16xf32>
    %41 = arith.addf %39, %40 : vector<8x16xf32>
    %42 = arith.mulf %29, %41 : vector<8x16xf32>
    %43 = arith.addf %38, %42 : vector<8x16xf32>
    %44 = math.tanh %43 : vector<8x16xf32>
    %cst_15 = arith.constant 1.000000e+00 : f32
    %45 = vector.broadcast %cst_15 : f32 to vector<8x16xf32>
    %46 = arith.subf %45, %37 : vector<8x16xf32>
    %47 = arith.mulf %46, %44 : vector<8x16xf32>
    %48 = arith.mulf %37, %9 : vector<8x16xf32>
    %49 = arith.addf %47, %48 : vector<8x16xf32>
    %c1_i32_16 = arith.constant 1 : i32
    %50 = arith.subi %c1_i32_16, %arg0 : i32
    %51 = arith.muli %50, %arg1 : i32
    %c2_i32 = arith.constant 2 : i32
    %52 = arith.subi %c2_i32, %arg1 : i32
    %53 = arith.muli %arg0, %52 : i32
    %54 = arith.addi %51, %53 : i32
    %c4_i32 = arith.constant 4 : i32
    %55 = arith.muli %54, %c4_i32 : i32
    %56 = arith.addi %55, %15 : i32
    %c10_i32 = arith.constant 10 : i32
    %57 = arith.cmpi slt, %56, %c10_i32 : i32
    %58 = arith.select %57, %49, %9 : vector<8x16xf32>
    %cst_17 = arith.constant 0.000000e+00 : f32
    %59 = vector.broadcast %cst_17 : f32 to vector<8x16xf32>
    %60 = arith.select %57, %58, %59 : vector<8x16xf32>
    %61 = arith.addf %10, %60 : vector<8x16xf32>
    %c1_i32_18 = arith.constant 1 : i32
    %c1_i32_19 = arith.constant 1 : i32
    %62 = arith.subi %c1_i32_19, %arg0 : i32
    %63 = arith.muli %62, %c1_i32_18 : i32
    %c3_i32_20 = arith.constant 3 : i32
    %64 = arith.subi %c3_i32_20, %c1_i32_18 : i32
    %65 = arith.muli %arg0, %64 : i32
    %66 = arith.addi %63, %65 : i32
    %c0_21 = arith.constant 0 : index
    %67 = arith.index_cast %66 : i32 to index
    %c0_22 = arith.constant 0 : index
    %c0_23 = arith.constant 0 : index
    %68 = vector.load %arg2[%c0_21, %67, %c0_22, %c0_23] : memref<1x4x8x48xbf16, #tpu.memory_space<vmem>>, vector<1x1x8x48xbf16>
    %69 = vector.shape_cast %68 : vector<1x1x8x48xbf16> to vector<8x48xbf16>
    %70 = arith.truncf %58 : vector<8x16xf32> to vector<8x16xbf16>
    %cst_24 = arith.constant dense<0.000000e+00> : vector<8x48xf32>
    %71 = tpu.matmul %70, %4, %cst_24 {dimension_numbers = #tpu.dot_dimension_numbers<[1], [0], [0], [1], [0, 0, 1, 1], [], []>} : vector<8x16xbf16>, vector<16x48xbf16>, vector<8x48xf32> -> vector<8x48xf32>
    %72 = arith.extf %69 : vector<8x48xbf16> to vector<8x48xf32>
    %73 = vector.extract_strided_slice %72 {offsets = [0, 0], sizes = [8, 16], strides = [1, 1]} : vector<8x48xf32> to vector<8x16xf32>
    %74 = vector.extract_strided_slice %71 {offsets = [0, 0], sizes = [8, 16], strides = [1, 1]} : vector<8x48xf32> to vector<8x16xf32>
    %75 = arith.addf %73, %74 : vector<8x16xf32>
    %76 = arith.negf %75 : vector<8x16xf32>
    %77 = math.exp %76 : vector<8x16xf32>
    %cst_25 = arith.constant 1.000000e+00 : f32
    %78 = vector.broadcast %cst_25 : f32 to vector<8x16xf32>
    %79 = arith.addf %78, %77 : vector<8x16xf32>
    %80 = arith.divf %78, %79 : vector<8x16xf32>
    %81 = vector.extract_strided_slice %72 {offsets = [0, 16], sizes = [8, 16], strides = [1, 1]} : vector<8x48xf32> to vector<8x16xf32>
    %82 = vector.extract_strided_slice %71 {offsets = [0, 16], sizes = [8, 16], strides = [1, 1]} : vector<8x48xf32> to vector<8x16xf32>
    %83 = arith.addf %81, %82 : vector<8x16xf32>
    %84 = arith.negf %83 : vector<8x16xf32>
    %85 = math.exp %84 : vector<8x16xf32>
    %cst_26 = arith.constant 1.000000e+00 : f32
    %86 = vector.broadcast %cst_26 : f32 to vector<8x16xf32>
    %87 = arith.addf %86, %85 : vector<8x16xf32>
    %88 = arith.divf %86, %87 : vector<8x16xf32>
    %89 = vector.extract_strided_slice %72 {offsets = [0, 32], sizes = [8, 16], strides = [1, 1]} : vector<8x48xf32> to vector<8x16xf32>
    %90 = vector.extract_strided_slice %71 {offsets = [0, 32], sizes = [8, 16], strides = [1, 1]} : vector<8x48xf32> to vector<8x16xf32>
    %91 = vector.broadcast %6 : vector<1x16xf32> to vector<8x16xf32>
    %92 = arith.addf %90, %91 : vector<8x16xf32>
    %93 = arith.mulf %80, %92 : vector<8x16xf32>
    %94 = arith.addf %89, %93 : vector<8x16xf32>
    %95 = math.tanh %94 : vector<8x16xf32>
    %cst_27 = arith.constant 1.000000e+00 : f32
    %96 = vector.broadcast %cst_27 : f32 to vector<8x16xf32>
    %97 = arith.subf %96, %88 : vector<8x16xf32>
    %98 = arith.mulf %97, %95 : vector<8x16xf32>
    %99 = arith.mulf %88, %58 : vector<8x16xf32>
    %100 = arith.addf %98, %99 : vector<8x16xf32>
    %c1_i32_28 = arith.constant 1 : i32
    %101 = arith.subi %c1_i32_28, %arg0 : i32
    %102 = arith.muli %101, %arg1 : i32
    %c2_i32_29 = arith.constant 2 : i32
    %103 = arith.subi %c2_i32_29, %arg1 : i32
    %104 = arith.muli %arg0, %103 : i32
    %105 = arith.addi %102, %104 : i32
    %c4_i32_30 = arith.constant 4 : i32
    %106 = arith.muli %105, %c4_i32_30 : i32
    %107 = arith.addi %106, %66 : i32
    %c10_i32_31 = arith.constant 10 : i32
    %108 = arith.cmpi slt, %107, %c10_i32_31 : i32
    %109 = arith.select %108, %100, %58 : vector<8x16xf32>
    %cst_32 = arith.constant 0.000000e+00 : f32
    %110 = vector.broadcast %cst_32 : f32 to vector<8x16xf32>
    %111 = arith.select %108, %109, %110 : vector<8x16xf32>
    %112 = arith.addf %61, %111 : vector<8x16xf32>
    %c2_i32_33 = arith.constant 2 : i32
    %c1_i32_34 = arith.constant 1 : i32
    %113 = arith.subi %c1_i32_34, %arg0 : i32
    %114 = arith.muli %113, %c2_i32_33 : i32
    %c3_i32_35 = arith.constant 3 : i32
    %115 = arith.subi %c3_i32_35, %c2_i32_33 : i32
    %116 = arith.muli %arg0, %115 : i32
    %117 = arith.addi %114, %116 : i32
    %c0_36 = arith.constant 0 : index
    %118 = arith.index_cast %117 : i32 to index
    %c0_37 = arith.constant 0 : index
    %c0_38 = arith.constant 0 : index
    %119 = vector.load %arg2[%c0_36, %118, %c0_37, %c0_38] : memref<1x4x8x48xbf16, #tpu.memory_space<vmem>>, vector<1x1x8x48xbf16>
    %120 = vector.shape_cast %119 : vector<1x1x8x48xbf16> to vector<8x48xbf16>
    %121 = arith.truncf %109 : vector<8x16xf32> to vector<8x16xbf16>
    %cst_39 = arith.constant dense<0.000000e+00> : vector<8x48xf32>
    %122 = tpu.matmul %121, %4, %cst_39 {dimension_numbers = #tpu.dot_dimension_numbers<[1], [0], [0], [1], [0, 0, 1, 1], [], []>} : vector<8x16xbf16>, vector<16x48xbf16>, vector<8x48xf32> -> vector<8x48xf32>
    %123 = arith.extf %120 : vector<8x48xbf16> to vector<8x48xf32>
    %124 = vector.extract_strided_slice %123 {offsets = [0, 0], sizes = [8, 16], strides = [1, 1]} : vector<8x48xf32> to vector<8x16xf32>
    %125 = vector.extract_strided_slice %122 {offsets = [0, 0], sizes = [8, 16], strides = [1, 1]} : vector<8x48xf32> to vector<8x16xf32>
    %126 = arith.addf %124, %125 : vector<8x16xf32>
    %127 = arith.negf %126 : vector<8x16xf32>
    %128 = math.exp %127 : vector<8x16xf32>
    %cst_40 = arith.constant 1.000000e+00 : f32
    %129 = vector.broadcast %cst_40 : f32 to vector<8x16xf32>
    %130 = arith.addf %129, %128 : vector<8x16xf32>
    %131 = arith.divf %129, %130 : vector<8x16xf32>
    %132 = vector.extract_strided_slice %123 {offsets = [0, 16], sizes = [8, 16], strides = [1, 1]} : vector<8x48xf32> to vector<8x16xf32>
    %133 = vector.extract_strided_slice %122 {offsets = [0, 16], sizes = [8, 16], strides = [1, 1]} : vector<8x48xf32> to vector<8x16xf32>
    %134 = arith.addf %132, %133 : vector<8x16xf32>
    %135 = arith.negf %134 : vector<8x16xf32>
    %136 = math.exp %135 : vector<8x16xf32>
    %cst_41 = arith.constant 1.000000e+00 : f32
    %137 = vector.broadcast %cst_41 : f32 to vector<8x16xf32>
    %138 = arith.addf %137, %136 : vector<8x16xf32>
    %139 = arith.divf %137, %138 : vector<8x16xf32>
    %140 = vector.extract_strided_slice %123 {offsets = [0, 32], sizes = [8, 16], strides = [1, 1]} : vector<8x48xf32> to vector<8x16xf32>
    %141 = vector.extract_strided_slice %122 {offsets = [0, 32], sizes = [8, 16], strides = [1, 1]} : vector<8x48xf32> to vector<8x16xf32>
    %142 = vector.broadcast %6 : vector<1x16xf32> to vector<8x16xf32>
    %143 = arith.addf %141, %142 : vector<8x16xf32>
    %144 = arith.mulf %131, %143 : vector<8x16xf32>
    %145 = arith.addf %140, %144 : vector<8x16xf32>
    %146 = math.tanh %145 : vector<8x16xf32>
    %cst_42 = arith.constant 1.000000e+00 : f32
    %147 = vector.broadcast %cst_42 : f32 to vector<8x16xf32>
    %148 = arith.subf %147, %139 : vector<8x16xf32>
    %149 = arith.mulf %148, %146 : vector<8x16xf32>
    %150 = arith.mulf %139, %109 : vector<8x16xf32>
    %151 = arith.addf %149, %150 : vector<8x16xf32>
    %c1_i32_43 = arith.constant 1 : i32
    %152 = arith.subi %c1_i32_43, %arg0 : i32
    %153 = arith.muli %152, %arg1 : i32
    %c2_i32_44 = arith.constant 2 : i32
    %154 = arith.subi %c2_i32_44, %arg1 : i32
    %155 = arith.muli %arg0, %154 : i32
    %156 = arith.addi %153, %155 : i32
    %c4_i32_45 = arith.constant 4 : i32
    %157 = arith.muli %156, %c4_i32_45 : i32
    %158 = arith.addi %157, %117 : i32
    %c10_i32_46 = arith.constant 10 : i32
    %159 = arith.cmpi slt, %158, %c10_i32_46 : i32
    %160 = arith.select %159, %151, %109 : vector<8x16xf32>
    %cst_47 = arith.constant 0.000000e+00 : f32
    %161 = vector.broadcast %cst_47 : f32 to vector<8x16xf32>
    %162 = arith.select %159, %160, %161 : vector<8x16xf32>
    %163 = arith.addf %112, %162 : vector<8x16xf32>
    %c3_i32_48 = arith.constant 3 : i32
    %c1_i32_49 = arith.constant 1 : i32
    %164 = arith.subi %c1_i32_49, %arg0 : i32
    %165 = arith.muli %164, %c3_i32_48 : i32
    %c3_i32_50 = arith.constant 3 : i32
    %166 = arith.subi %c3_i32_50, %c3_i32_48 : i32
    %167 = arith.muli %arg0, %166 : i32
    %168 = arith.addi %165, %167 : i32
    %c0_51 = arith.constant 0 : index
    %169 = arith.index_cast %168 : i32 to index
    %c0_52 = arith.constant 0 : index
    %c0_53 = arith.constant 0 : index
    %170 = vector.load %arg2[%c0_51, %169, %c0_52, %c0_53] : memref<1x4x8x48xbf16, #tpu.memory_space<vmem>>, vector<1x1x8x48xbf16>
    %171 = vector.shape_cast %170 : vector<1x1x8x48xbf16> to vector<8x48xbf16>
    %172 = arith.truncf %160 : vector<8x16xf32> to vector<8x16xbf16>
    %cst_54 = arith.constant dense<0.000000e+00> : vector<8x48xf32>
    %173 = tpu.matmul %172, %4, %cst_54 {dimension_numbers = #tpu.dot_dimension_numbers<[1], [0], [0], [1], [0, 0, 1, 1], [], []>} : vector<8x16xbf16>, vector<16x48xbf16>, vector<8x48xf32> -> vector<8x48xf32>
    %174 = arith.extf %171 : vector<8x48xbf16> to vector<8x48xf32>
    %175 = vector.extract_strided_slice %174 {offsets = [0, 0], sizes = [8, 16], strides = [1, 1]} : vector<8x48xf32> to vector<8x16xf32>
    %176 = vector.extract_strided_slice %173 {offsets = [0, 0], sizes = [8, 16], strides = [1, 1]} : vector<8x48xf32> to vector<8x16xf32>
    %177 = arith.addf %175, %176 : vector<8x16xf32>
    %178 = arith.negf %177 : vector<8x16xf32>
    %179 = math.exp %178 : vector<8x16xf32>
    %cst_55 = arith.constant 1.000000e+00 : f32
    %180 = vector.broadcast %cst_55 : f32 to vector<8x16xf32>
    %181 = arith.addf %180, %179 : vector<8x16xf32>
    %182 = arith.divf %180, %181 : vector<8x16xf32>
    %183 = vector.extract_strided_slice %174 {offsets = [0, 16], sizes = [8, 16], strides = [1, 1]} : vector<8x48xf32> to vector<8x16xf32>
    %184 = vector.extract_strided_slice %173 {offsets = [0, 16], sizes = [8, 16], strides = [1, 1]} : vector<8x48xf32> to vector<8x16xf32>
    %185 = arith.addf %183, %184 : vector<8x16xf32>
    %186 = arith.negf %185 : vector<8x16xf32>
    %187 = math.exp %186 : vector<8x16xf32>
    %cst_56 = arith.constant 1.000000e+00 : f32
    %188 = vector.broadcast %cst_56 : f32 to vector<8x16xf32>
    %189 = arith.addf %188, %187 : vector<8x16xf32>
    %190 = arith.divf %188, %189 : vector<8x16xf32>
    %191 = vector.extract_strided_slice %174 {offsets = [0, 32], sizes = [8, 16], strides = [1, 1]} : vector<8x48xf32> to vector<8x16xf32>
    %192 = vector.extract_strided_slice %173 {offsets = [0, 32], sizes = [8, 16], strides = [1, 1]} : vector<8x48xf32> to vector<8x16xf32>
    %193 = vector.broadcast %6 : vector<1x16xf32> to vector<8x16xf32>
    %194 = arith.addf %192, %193 : vector<8x16xf32>
    %195 = arith.mulf %182, %194 : vector<8x16xf32>
    %196 = arith.addf %191, %195 : vector<8x16xf32>
    %197 = math.tanh %196 : vector<8x16xf32>
    %cst_57 = arith.constant 1.000000e+00 : f32
    %198 = vector.broadcast %cst_57 : f32 to vector<8x16xf32>
    %199 = arith.subf %198, %190 : vector<8x16xf32>
    %200 = arith.mulf %199, %197 : vector<8x16xf32>
    %201 = arith.mulf %190, %160 : vector<8x16xf32>
    %202 = arith.addf %200, %201 : vector<8x16xf32>
    %c1_i32_58 = arith.constant 1 : i32
    %203 = arith.subi %c1_i32_58, %arg0 : i32
    %204 = arith.muli %203, %arg1 : i32
    %c2_i32_59 = arith.constant 2 : i32
    %205 = arith.subi %c2_i32_59, %arg1 : i32
    %206 = arith.muli %arg0, %205 : i32
    %207 = arith.addi %204, %206 : i32
    %c4_i32_60 = arith.constant 4 : i32
    %208 = arith.muli %207, %c4_i32_60 : i32
    %209 = arith.addi %208, %168 : i32
    %c10_i32_61 = arith.constant 10 : i32
    %210 = arith.cmpi slt, %209, %c10_i32_61 : i32
    %211 = arith.select %210, %202, %160 : vector<8x16xf32>
    %cst_62 = arith.constant 0.000000e+00 : f32
    %212 = vector.broadcast %cst_62 : f32 to vector<8x16xf32>
    %213 = arith.select %210, %211, %212 : vector<8x16xf32>
    %214 = arith.addf %163, %213 : vector<8x16xf32>
    %c4_i32_63 = arith.constant 4 : i32
    %215 = arith.index_cast %arg0 : i32 to index
    %c0_64 = arith.constant 0 : index
    %c0_65 = arith.constant 0 : index
    %216 = vector.load %arg7[%215, %c0_64, %c0_65] : memref<2x8x16xf32, #tpu.memory_space<vmem>>, vector<1x8x16xf32>
    %217 = vector.shape_cast %216 : vector<1x8x16xf32> to vector<8x16xf32>
    %218 = vector.shape_cast %211 : vector<8x16xf32> to vector<1x8x16xf32>
    tpu.vector_store %arg7[%215, %c0_64, %c0_65], %218 {strides = array<i32>} : memref<2x8x16xf32, #tpu.memory_space<vmem>>, vector<1x8x16xf32>,
    %c0_66 = arith.constant 0 : index
    %c0_67 = arith.constant 0 : index
    %c0_68 = arith.constant 0 : index
    %219 = vector.load %arg6[%c0_66, %c0_67, %c0_68] : memref<1x8x16xf32, #tpu.memory_space<vmem>>, vector<1x8x16xf32>
    %220 = vector.shape_cast %219 : vector<1x8x16xf32> to vector<8x16xf32>
    %221 = arith.addf %220, %214 : vector<8x16xf32>
    %c0_69 = arith.constant 0 : index
    %c0_70 = arith.constant 0 : index
    %c0_71 = arith.constant 0 : index
    %222 = vector.load %arg6[%c0_69, %c0_70, %c0_71] : memref<1x8x16xf32, #tpu.memory_space<vmem>>, vector<1x8x16xf32>
    %223 = vector.shape_cast %222 : vector<1x8x16xf32> to vector<8x16xf32>
    %224 = vector.shape_cast %221 : vector<8x16xf32> to vector<1x8x16xf32>
    tpu.vector_store %arg6[%c0_69, %c0_70, %c0_71], %224 {strides = array<i32>} : memref<1x8x16xf32, #tpu.memory_space<vmem>>, vector<1x8x16xf32>,
    return
  }
  func.func @transform_0(%arg0: i32, %arg1: i32) -> (i32, i32, i32, i32) {
    %c1_i32 = arith.constant 1 : i32
    %0 = arith.subi %c1_i32, %arg0 : i32
    %1 = arith.muli %0, %arg1 : i32
    %c2_i32 = arith.constant 2 : i32
    %2 = arith.subi %c2_i32, %arg1 : i32
    %3 = arith.muli %arg0, %2 : i32
    %4 = arith.addi %1, %3 : i32
    %c0_i32 = arith.constant 0 : i32
    %c0_i32_0 = arith.constant 0 : i32
    %c0_i32_1 = arith.constant 0 : i32
    return %arg0, %4, %c0_i32, %c0_i32_0 : i32, i32, i32, i32
  }
  func.func @transform_1(%arg0: i32, %arg1: i32) -> (i32, i32, i32) {
    %c0_i32 = arith.constant 0 : i32
    %c0_i32_0 = arith.constant 0 : i32
    %c0_i32_1 = arith.constant 0 : i32
    return %arg0, %c0_i32, %c0_i32_0 : i32, i32, i32
  }
  func.func @transform_2(%arg0: i32, %arg1: i32) -> (i32, i32, i32) {
    %c0_i32 = arith.constant 0 : i32
    %c0_i32_0 = arith.constant 0 : i32
    %c0_i32_1 = arith.constant 0 : i32
    return %arg0, %c0_i32, %c0_i32_0 : i32, i32, i32
  }
  func.func @transform_3(%arg0: i32, %arg1: i32) -> (i32, i32, i32) {
    %c0_i32 = arith.constant 0 : i32
    %c0_i32_0 = arith.constant 0 : i32
    %c0_i32_1 = arith.constant 0 : i32
    return %arg0, %c0_i32, %c0_i32_0 : i32, i32, i32
  }
  func.func @transform_4(%arg0: i32, %arg1: i32) -> (i32, i32, i32) {
    %c0_i32 = arith.constant 0 : i32
    %c0_i32_0 = arith.constant 0 : i32
    %c0_i32_1 = arith.constant 0 : i32
    return %arg0, %c0_i32, %c0_i32_0 : i32, i32, i32
  }
}

</mosaic_0001>

<llo_original>
// kernel: tpu_custom_call.1
$region0: #{tpu_custom_call.1}
  #allocation0 [shape = 'u32[]', space=smem, size = 0x4, offset = 0x4, fixed_abs, tag = 'smem constant byte address 0x4 - core index']
  #allocation1 [shape = 'u32[144,128]{1,0:T(1,128)}', space=vmem, size = 0x12000, scoped, tag = 'internal scratch']
  #allocation2 [shape = 'f32[2,8,16]{2,1,0:T(8,128)}', space=vmem, size = 0x2000, scoped, tag = 'scratch operand']
  %s0 = inlined_call_operand.hbm [shape: bf16[2,12,8,48], index: 0, kind: input, shape index: {}]
  %s1 = inlined_call_operand.hbm [shape: f32[2,8,16], index: 1, kind: input, shape index: {}]
  %s2 = inlined_call_operand.hbm [shape: bf16[2,16,48], index: 2, kind: input, shape index: {}]
  %s3 = inlined_call_operand.vmem [shape: f32[2,1,16], index: 3, kind: input, shape index: {}]
  %s4 = inlined_call_operand.hbm [shape: f32[2,8,16], index: 4, kind: output, shape index: {}]
  %s5 = sld [smem:[#allocation0]]
  $region65: #{tpu_custom_call.1} parent=0
    _
  %s7 = ssub.s32 1, %s5
  %s8 = scalar_select 0, %s7, %s5
  $region1: #{tpu_custom_call.1} parent=0
    #allocation3 [shape = 'u8[16384]{0}', space=vmem, size = 0x4000, scoped, tag = 'input window, operand 0']
    #allocation4 [shape = 's32[2]{0}', space=sflag, size = 0x8, scoped, tag = 'scoped memory for tpu_custom_call.1']
    #allocation5 [shape = 's32[2]{0}', space=sflag, size = 0x8, scoped, tag = 'scoped memory for tpu_custom_call.1']
    #allocation6 [shape = 'u8[8192]{0}', space=vmem, size = 0x2000, scoped, tag = 'input window, operand 1']
    #allocation7 [shape = 's32[2]{0}', space=sflag, size = 0x8, scoped, tag = 'scoped memory for tpu_custom_call.1']
    #allocation8 [shape = 'u8[8192]{0}', space=vmem, size = 0x2000, scoped, tag = 'input window, operand 2']
    #allocation9 [shape = 'u8[8192]{0}', space=vmem, size = 0x2000, scoped, tag = 'output window, operand 0']
    %9 = vsyncpa [#allocation4], 0
    %s10 = scalar_lea.sflag [#allocation4], 1
    %11 = vsyncpa %s10, 0
    %12 = vsyncpa [#allocation7], 0
    %s13 = scalar_lea.sflag [#allocation7], 1
    %14 = vsyncpa %s13, 0
    %15 = vsyncpa [#allocation5], 0
    %s16 = scalar_lea.sflag [#allocation5], 1
    %17 = vsyncpa %s16, 0
    loop: start=0, step=1, limit=8
    $region2: #{tpu_custom_call.1} parent=1 // loop_pre_header
      _
    $region3: #{tpu_custom_call.1} parent=1 // loop_header
      %s19 = sphi 0, %s23
      %p20 = scmp.ge.s32.totalorder %s19, 8
      %s26 = sphi 0, %s38
      %s27 = sphi 0, %s34
      %s28 = sphi 0, %s26
      %s29 = sphi 0, %s27
      %s30 = sphi 0, %s28
      %s31 = sphi 0, %s29
      %s53 = sphi 0, %s55
      %s56 = sphi 0, %s53
      %s57 = sphi 0, %s56
      %s73 = sphi 0, %s57
      %s79 = sphi 0, %s81
      %s82 = sphi 0, %s79
      %s83 = sphi 0, %s82
      %s99 = sphi 0, %s83
      %s105 = sphi 0, %s107
      %s108 = sphi 0, %s105
      %s109 = sphi 0, %s108
      %s125 = sphi 0, %s109
      %s131 = sphi 0, %s133
      %s134 = sphi 0, %s131
      %s135 = sphi 0, %s134
      %s151 = sphi 0, %s135
      %s157 = sphi 0, %s159
      %s160 = sphi 0, %s157
      %s161 = sphi 0, %s160
      %s177 = sphi 0, %s161
    $region4: #{tpu_custom_call.1} parent=1 // loop_header_branch
      %22 = sbr.rel (%p20) target = $region8
    $region5: #{tpu_custom_call.1} parent=1 // loop_body
      %s24 = ssub.s32 %s19, 1
      %s25 = ssub.s32 %s19, 2
      %s32 = sadd.s32 1, %s27
      %p33 = scmp.ge.s32.totalorder %s32, 3
      %s34 = scalar_select %p33, 0, %s32
      %s35 = sadd.s32 1, %s26
      %s36 = scalar_select %p33, %s35, %s26
      %p37 = scmp.ge.s32.totalorder %s36, 2
      %s38 = scalar_select %p37, 0, %s36
      %s39 = ssub.s32 1, %s26
      %s40 = smul.u32 %s39, %s27
      %s41 = ssub.s32 2, %s27
      %s42 = smul.u32 %s26, %s41
      %s43 = sadd.s32 %s40, %s42
      %s44 = ssub.s32 1, %s38
      %s45 = smul.u32 %s44, %s34
      %s46 = ssub.s32 2, %s34
      %s47 = smul.u32 %s38, %s46
      %s48 = sadd.s32 %s45, %s47
      %s49 = ssub.s32 %s26, %s38
      %s50 = ssub.s32 %s43, %s48
      %s51 = sor.u32 %s49, %s50
      %p52 = scmp.eq.s32.totalorder %s51, 0
      %s54 = sadd.s32 %s53, 1
      %s55 = scalar_select %p52, %s53, %s54
      %p58 = pneg %p52
      %p59 = scmp.eq.s32.totalorder %s19, 5
      %p60 = por %p58, %p59
      %p61 = scmp.ne.s32.totalorder %s53, %s56
      %p62 = scmp.eq.s32.totalorder %s19, 0
      %p63 = por %p61, %p62
      %p64 = scmp.ne.s32.totalorder %s53, %s56
      %p65 = scmp.eq.s32.totalorder %s24, 5
      %p66 = por %p64, %p65
      %p67 = scmp.ne.s32.totalorder %s56, %s57
      %p68 = scmp.eq.s32.totalorder %s24, 0
      %p69 = por %p67, %p68
      %p70 = scmp.ne.s32.totalorder %s56, %s57
      %p71 = scmp.eq.s32.totalorder %s25, 5
      %p72 = por %p70, %p71
      %p74 = scmp.ne.s32.totalorder %s57, %s73
      %p75 = scmp.eq.s32.totalorder %s25, 0
      %p76 = por %p74, %p75
      %s77 = ssub.s32 %s26, %s38
      %p78 = scmp.eq.s32.totalorder %s77, 0
      %s80 = sadd.s32 %s79, 1
      %s81 = scalar_select %p78, %s79, %s80
      %p84 = pneg %p78
      %p85 = scmp.eq.s32.totalorder %s19, 5
      %p86 = por %p84, %p85
      %p87 = scmp.ne.s32.totalorder %s79, %s82
      %p88 = scmp.eq.s32.totalorder %s19, 0
      %p89 = por %p87, %p88
      %p90 = scmp.ne.s32.totalorder %s79, %s82
      %p91 = scmp.eq.s32.totalorder %s24, 5
      %p92 = por %p90, %p91
      %p93 = scmp.ne.s32.totalorder %s82, %s83
      %p94 = scmp.eq.s32.totalorder %s24, 0
      %p95 = por %p93, %p94
      %p96 = scmp.ne.s32.totalorder %s82, %s83
      %p97 = scmp.eq.s32.totalorder %s25, 5
      %p98 = por %p96, %p97
      %p100 = scmp.ne.s32.totalorder %s83, %s99
      %p101 = scmp.eq.s32.totalorder %s25, 0
      %p102 = por %p100, %p101
      %s103 = ssub.s32 %s26, %s38
      %p104 = scmp.eq.s32.totalorder %s103, 0
      %s106 = sadd.s32 %s105, 1
      %s107 = scalar_select %p104, %s105, %s106
      %p110 = pneg %p104
      %p111 = scmp.eq.s32.totalorder %s19, 5
      %p112 = por %p110, %p111
      %p113 = scmp.ne.s32.totalorder %s105, %s108
      %p114 = scmp.eq.s32.totalorder %s19, 0
      %p115 = por %p113, %p114
      %p116 = scmp.ne.s32.totalorder %s105, %s108
      %p117 = scmp.eq.s32.totalorder %s24, 5
      %p118 = por %p116, %p117
      %p119 = scmp.ne.s32.totalorder %s108, %s109
      %p120 = scmp.eq.s32.totalorder %s24, 0
      %p121 = por %p119, %p120
      %p122 = scmp.ne.s32.totalorder %s108, %s109
      %p123 = scmp.eq.s32.totalorder %s25, 5
      %p124 = por %p122, %p123
      %p126 = scmp.ne.s32.totalorder %s109, %s125
      %p127 = scmp.eq.s32.totalorder %s25, 0
      %p128 = por %p126, %p127
      %s129 = ssub.s32 %s26, %s38
      %p130 = scmp.eq.s32.totalorder %s129, 0
      %s132 = sadd.s32 %s131, 1
      %s133 = scalar_select %p130, %s131, %s132
      %p136 = pneg %p130
      %p137 = scmp.eq.s32.totalorder %s19, 5
      %p138 = por %p136, %p137
      %p139 = scmp.ne.s32.totalorder %s131, %s134
      %p140 = scmp.eq.s32.totalorder %s19, 0
      %p141 = por %p139, %p140
      %p142 = scmp.ne.s32.totalorder %s131, %s134
      %p143 = scmp.eq.s32.totalorder %s24, 5
      %p144 = por %p142, %p143
      %p145 = scmp.ne.s32.totalorder %s134, %s135
      %p146 = scmp.eq.s32.totalorder %s24, 0
      %p147 = por %p145, %p146
      %p148 = scmp.ne.s32.totalorder %s134, %s135
      %p149 = scmp.eq.s32.totalorder %s25, 5
      %p150 = por %p148, %p149
      %p152 = scmp.ne.s32.totalorder %s135, %s151
      %p153 = scmp.eq.s32.totalorder %s25, 0
      %p154 = por %p152, %p153
      %s155 = ssub.s32 %s26, %s38
      %p156 = scmp.eq.s32.totalorder %s155, 0
      %s158 = sadd.s32 %s157, 1
      %s159 = scalar_select %p156, %s157, %s158
      %p162 = pneg %p156
      %p163 = scmp.eq.s32.totalorder %s19, 5
      %p164 = por %p162, %p163
      %p165 = scmp.ne.s32.totalorder %s157, %s160
      %p166 = scmp.eq.s32.totalorder %s19, 0
      %p167 = por %p165, %p166
      %p168 = scmp.ne.s32.totalorder %s157, %s160
      %p169 = scmp.eq.s32.totalorder %s24, 5
      %p170 = por %p168, %p169
      %p171 = scmp.ne.s32.totalorder %s160, %s161
      %p172 = scmp.eq.s32.totalorder %s24, 0
      %p173 = por %p171, %p172
      %p174 = scmp.ne.s32.totalorder %s160, %s161
      %p175 = scmp.eq.s32.totalorder %s25, 5
      %p176 = por %p174, %p175
      %p178 = scmp.ne.s32.totalorder %s161, %s177
      %p179 = scmp.eq.s32.totalorder %s25, 0
      %p180 = por %p178, %p179
      %p181 = scmp.le.s32.totalorder 1, %s19
      %p182 = scmp.lt.s32.totalorder %s19, 7
      %p183 = pnand %p181, %p182
      %p184 = pneg %p183
      // Predicated region
      $region9: #{tpu_custom_call.1} parent=5 // pred_check
        _
      $region10: #{tpu_custom_call.1} parent=5 // pred_check_branch
        %186 = sbr.rel (%p183) target = $region12
      $region11: #{tpu_custom_call.1} parent=5 // pred_region
        %s187 = ssub.s32 %s19, 1
      $region12: #{tpu_custom_call.1} parent=5 // pred_fallthru
        _
      %p188 = scmp.lt.s32.totalorder %s19, 6
      // Predicated region
      $region13: #{tpu_custom_call.1} parent=5 // pred_check
        %p189 = pneg %p188
      $region14: #{tpu_custom_call.1} parent=5 // pred_check_branch
        %191 = sbr.rel (%p189) target = $region16
      $region15: #{tpu_custom_call.1} parent=5 // pred_region
        // Predicated region
        $region17: #{tpu_custom_call.1} parent=15 // pred_check
          %p192 = pneg %p63
        $region18: #{tpu_custom_call.1} parent=15 // pred_check_branch
          %194 = sbr.rel (%p192) target = $region20
        $region19: #{tpu_custom_call.1} parent=15 // pred_region
          %s195 = sand.u32 %s53, 1
          %s196 = scalar_lea.sflag [#allocation4], %s195
          %s197 = sand.u32 %s53, 1
          %s198 = smul.addr %s197, 16
          %s199 = scalar_lea.vmem [#allocation3], %s198
          %s200 = ssub.s32 1, %s26
          %s201 = smul.u32 %s200, %s27
          %s202 = ssub.s32 2, %s27
          %s203 = smul.u32 %s26, %s202
          %s204 = sadd.s32 %s201, %s203
          %s205 = smul.u32 4, %s204
          %s207 = ssub.s32 256, 256
          %208 = vsyncadd %s196, %s207
          %s209 = smul.addr %s26, 12
          %s210 = sadd.s32 %s205, %s209
          %s211 = smul.addr %s210, 64
          %s212 = scalar_lea.hbm %s0, %s211
          %s213 = sshll.u32 %s199, 4
          %s214 = int_to_ptr.vmem [resolvable:$true] %s213
          %219 = dma.hbm_to_vmem [thread:$0]  %s212, 256, %s214, %s196, 64, 64, 4
        $region20: #{tpu_custom_call.1} parent=15 // pred_fallthru
          _
        // Predicated region
        $region21: #{tpu_custom_call.1} parent=15 // pred_check
          %p220 = pneg %p89
        $region22: #{tpu_custom_call.1} parent=15 // pred_check_branch
          %222 = sbr.rel (%p220) target = $region24
        $region23: #{tpu_custom_call.1} parent=15 // pred_region
          %s223 = sand.u32 %s19, 1
          %s224 = scalar_lea.sflag [#allocation7], %s223
          %s225 = sand.u32 %s79, 1
          %s226 = smul.addr %s225, 8
          %s227 = scalar_lea.vmem [#allocation6], %s226
          %s229 = ssub.s32 128, 128
          %230 = vsyncadd %s224, %s229
          %s231 = smul.addr %s26, 128
          %s232 = scalar_lea.hbm %s1, %s231
          %s234 = sshll.u32 %s227, 4
          %s235 = int_to_ptr.vmem [resolvable:$true] %s234
          %237 = dma.hbm_to_vmem [thread:$0]  %s232, 128, %s235, %s224
        $region24: #{tpu_custom_call.1} parent=15 // pred_fallthru
          _
        // Predicated region
        $region25: #{tpu_custom_call.1} parent=15 // pred_check
          %p238 = pneg %p115
        $region26: #{tpu_custom_call.1} parent=15 // pred_check_branch
          %240 = sbr.rel (%p238) target = $region28
        $region27: #{tpu_custom_call.1} parent=15 // pred_region
          %s241 = sand.u32 %s19, 1
          %s242 = scalar_lea.sflag [#allocation7], %s241
          %s243 = sand.u32 %s105, 1
          %s244 = smul.addr %s243, 8
          %s245 = scalar_lea.vmem [#allocation8], %s244
          %s247 = ssub.s32 128, 128
          %248 = vsyncadd %s242, %s247
          %s249 = smul.addr %s26, 2
          %s250 = smul.addr %s249, 64
          %s251 = scalar_lea.hbm %s2, %s250
          %s252 = sshll.u32 %s245, 4
          %s253 = int_to_ptr.vmem [resolvable:$true] %s252
          %258 = dma.hbm_to_vmem [thread:$0]  %s251, 128, %s253, %s242, 64, 64, 4
        $region28: #{tpu_custom_call.1} parent=15 // pred_fallthru
          _
        // Predicated region
        $region29: #{tpu_custom_call.1} parent=15 // pred_check
          %p259 = pneg %p141
        $region30: #{tpu_custom_call.1} parent=15 // pred_check_branch
          %261 = sbr.rel (%p259) target = $region32
        $region31: #{tpu_custom_call.1} parent=15 // pred_region
          %p262 = scmp.lt.s32.totalorder %s26, 1
          %s263 = scalar_select %p262, %s26, 1
          %s264 = scalar_lea.vmem %s3, %s263
        $region32: #{tpu_custom_call.1} parent=15 // pred_fallthru
          _
      $region16: #{tpu_custom_call.1} parent=5 // pred_fallthru
        _
      %p265 = scmp.le.s32.totalorder 1, %s19
      %p266 = scmp.lt.s32.totalorder %s19, 7
      %p267 = pnand %p265, %p266
      %p268 = pneg %p267
      // Predicated region
      $region33: #{tpu_custom_call.1} parent=5 // pred_check
        _
      $region34: #{tpu_custom_call.1} parent=5 // pred_check_branch
        %270 = sbr.rel (%p267) target = $region36
      $region35: #{tpu_custom_call.1} parent=5 // pred_region
        %s271 = ssub.s32 %s19, 1
        %s272 = sand.u32 %s56, 1
        %s273 = scalar_lea.sflag [#allocation4], %s272
        %s274 = sand.u32 %s56, 1
        %s275 = smul.addr %s274, 16
        %s276 = scalar_lea.vmem [#allocation3], %s275
        // Predicated region
        $region37: #{tpu_custom_call.1} parent=35 // pred_check
          %p277 = pneg %p69
        $region38: #{tpu_custom_call.1} parent=35 // pred_check_branch
          %279 = sbr.rel (%p277) target = $region40
        $region39: #{tpu_custom_call.1} parent=35 // pred_region
          %280 = dma.done %s273, 256
        $region40: #{tpu_custom_call.1} parent=35 // pred_fallthru
          _
        %s281 = sand.u32 %s24, 1
        %s282 = scalar_lea.sflag [#allocation7], %s281
        %s283 = sand.u32 %s82, 1
        %s284 = smul.addr %s283, 8
        %s285 = scalar_lea.vmem [#allocation6], %s284
        // Predicated region
        $region41: #{tpu_custom_call.1} parent=35 // pred_check
          %p286 = pneg %p95
        $region42: #{tpu_custom_call.1} parent=35 // pred_check_branch
          %288 = sbr.rel (%p286) target = $region44
        $region43: #{tpu_custom_call.1} parent=35 // pred_region
          %289 = dma.done %s282, 128
        $region44: #{tpu_custom_call.1} parent=35 // pred_fallthru
          _
        %s290 = sand.u32 %s24, 1
        %s291 = scalar_lea.sflag [#allocation7], %s290
        %s292 = sand.u32 %s108, 1
        %s293 = smul.addr %s292, 8
        %s294 = scalar_lea.vmem [#allocation8], %s293
        // Predicated region
        $region45: #{tpu_custom_call.1} parent=35 // pred_check
          %p295 = pneg %p121
        $region46: #{tpu_custom_call.1} parent=35 // pred_check_branch
          %297 = sbr.rel (%p295) target = $region48
        $region47: #{tpu_custom_call.1} parent=35 // pred_region
          %298 = dma.done %s291, 128
        $region48: #{tpu_custom_call.1} parent=35 // pred_fallthru
          _
        %s299 = sand.u32 %s56, 1
        %s300 = scalar_lea.sflag [#allocation4], %s299
        %s301 = sand.u32 %s56, 1
        %s302 = smul.addr %s301, 16
        %s303 = scalar_lea.vmem [#allocation3], %s302
        %p304 = pneg %p69
        %p305 = pneg %p66
        %s306 = sand.u32 %s24, 1
        %s307 = scalar_lea.sflag [#allocation7], %s306
        %s308 = sand.u32 %s82, 1
        %s309 = smul.addr %s308, 8
        %s310 = scalar_lea.vmem [#allocation6], %s309
        %p311 = pneg %p95
        %p312 = pneg %p92
        %s313 = sand.u32 %s24, 1
        %s314 = scalar_lea.sflag [#allocation7], %s313
        %s315 = sand.u32 %s108, 1
        %s316 = smul.addr %s315, 8
        %s317 = scalar_lea.vmem [#allocation8], %s316
        %p318 = pneg %p121
        %p319 = pneg %p118
        %p320 = scmp.lt.s32.totalorder %s28, 1
        %s321 = scalar_select %p320, %s28, 1
        %s322 = scalar_lea.vmem %s3, %s321
        %p323 = pneg %p147
        %p324 = pneg %p144
        %p325 = pneg %p173
        %p326 = pneg %p170
        %s327 = sand.u32 %s160, 1
        %s328 = scalar_lea.sflag [#allocation5], %s327
        %s329 = sand.u32 %s160, 1
        %s330 = smul.addr %s329, 8
        %s331 = scalar_lea.vmem [#allocation9], %s330
        %s332 = ssub.s32 1, %s28
        %s333 = smul.u32 %s332, %s29
        %s334 = ssub.s32 2, %s29
        %s335 = smul.u32 %s28, %s334
        %s336 = sadd.s32 %s333, %s335
        %s337 = smul.u32 4, %s336
        %p338 = scmp.lt.s32.totalorder %s28, 1
        %s339 = scalar_select %p338, %s28, 1
        %s340 = scalar_lea.vmem %s3, %s339
        %p342 = scmp.eq.s32.totalorder %s29, 0
        // Predicated region
        $region49: #{tpu_custom_call.1} parent=35 // pred_check
          %p343 = pneg %p342
        $region50: #{tpu_custom_call.1} parent=35 // pred_check_branch
          %345 = sbr.rel (%p343) target = $region52
        $region51: #{tpu_custom_call.1} parent=35 // pred_region
          %v346 = vld [vmem:[%s285] sm:$0xff]
          %s347 = smul.u32 %s28, 8
          %s348 = scalar_lea.vmem [#allocation2], %s347
          %vm349 = vcmask 130048
          %350 = vst.msk [vmem:[%s348] sm:$0xff] %vm349, %v346
          %351 = vst.msk [vmem:[%s331] sm:$0xff] %vm349, 0.0
        $region52: #{tpu_custom_call.1} parent=35 // pred_fallthru
          _
        %v352 = vld [vmem:[%s294] sm:$0xf]
        %v353 = vld [vmem:[%s294 + $0x4] sm:$0xf]
        %v354 = vld [vmem:[%s340] sm:$0x1]
        %s355 = smul.u32 %s28, 8
        %s356 = scalar_lea.vmem [#allocation2], %s355
        %v357 = vld [vmem:[%s356] sm:$0xff]
        %s358 = smul.u32 %s28, 3
        %s359 = smul.addr %s358, 4
        %s360 = scalar_lea.vmem %s276, %s359 [#allocation3]
        %v361 = vld [vmem:[%s360] sm:$0xf]
        %v362 = vpack.c.bf16 %v357, %v357
        %v365 = vunpack.c.l.b16 %v352
        %v366 = vunpack.c.l.b16 %v353
        %v367 = vpack.c.b16 %v366, %v365
        %vm369 = vcmask 130048
        %v371 = vsel %vm369, %v362, 0
        %373 = vmatprep.subr.bf16.mxu0 0
        %374 = vmatpush1.bf16.msra.mxu0 %v367
        %375 = vmatprep.subr.bf16.mxu0 0
        %376 = vmatpush1.bf16.msra.mxu0 0
        %377 = vmatprep.subr.bf16.mxu0 0
        %378 = vmatpush1.bf16.msra.mxu0 0
        %379 = vmatprep.subr.bf16.mxu0 0
        %380 = vmatpush1.bf16.msra.mxu0 0
        %381 = vmatprep.subr.bf16.mxu0 0
        %382 = vmatpush1.bf16.msra.mxu0 0
        %383 = vmatprep.subr.bf16.mxu0 0
        %384 = vmatpush1.bf16.msra.mxu0 0
        %385 = vmatprep.subr.bf16.mxu0 0
        %386 = vmatpush1.bf16.msra.mxu0 0
        %387 = vmatprep.subr.bf16.mxu0 0
        %388 = vmatpush1.bf16.msra.mxu0 0
        %389 = vmatprep.subr.bf16.mxu0 0
        %390 = vmatpush1.bf16.msra.mxu0 0
        %391 = vmatprep.subr.bf16.mxu0 0
        %392 = vmatpush1.bf16.msra.mxu0 0
        %393 = vmatprep.subr.bf16.mxu0 0
        %394 = vmatpush1.bf16.msra.mxu0 0
        %395 = vmatprep.subr.bf16.mxu0 0
        %396 = vmatpush1.bf16.msra.mxu0 0
        %397 = vmatprep.subr.bf16.mxu0 0
        %398 = vmatpush1.bf16.msra.mxu0 0
        %399 = vmatprep.subr.bf16.mxu0 0
        %400 = vmatpush1.bf16.msra.mxu0 0
        %401 = vmatprep.subr.bf16.mxu0 0
        %402 = vmatpush1.bf16.msra.mxu0 0
        %403 = vmatprep.subr.bf16.mxu0 0
        %404 = vmatpush1.bf16.msra.mxu0 0
        %405 = vmatprep.mubr.bf16.mxu0 0
        %406 = vmatmul.mubr.bf16.gmra.mrb[0].mxu0 %v371
        %v407 = vpop.f32.mrb[0].mxu0
        %v408 = vadd.f32 0.0, %v407
        %v409 = vpop.f32.mrb[0].mxu0
        %v410 = vpop.f32.mrb[0].mxu0
        %v411 = vpop.f32.mrb[0].mxu0
        %412 = vdwg.mxu0
        %v413 = vunpack.c.l.bf16 %v361
        %v414 = vadd.f32 %v413, %v408
        %v415 = vxor.u32 %v414, 2147483648
        %v416 = vmul.f32 %v415, 1.442695
        %v417 = vpow.pop %v416
        %v418 = vadd.f32 %v417, 1.0
        %v419 = vrcp.pop %v418
        %v420 = vmul.f32 1.0, %v419
        %v422 = vlaneseq
        %v423 = vshrl.u32 %v422, 7
        %v424 = vsub.s32 0, %v423
        %v425 = vrot.slane %v354, %v424
        %426 = vrot.lane.b32.xlu0 %v425, 32
        %v427 = vpop.permute.xlu0 %426
        %v429 = vadd.f32 %v408, %v427
        %431 = vrot.lane.b32.xlu0 %v429, 96
        %v432 = vpop.permute.xlu0 %431
        %v434 = vmul.f32 %v420, %v432
        %436 = vrot.lane.b32.xlu0 %v434, 32
        %v437 = vpop.permute.xlu0 %436
        %v439 = vadd.f32 %v413, %v437
        %v440 = vtanh.pop %v439
        %v441 = vsub.f32 1.0, %v420
        %443 = vrot.lane.b32.xlu0 %v440, 112
        %v444 = vpop.permute.xlu0 %443
        %v446 = vmul.f32 %v441, %v444
        %448 = vrot.lane.b32.xlu0 %v357, 16
        %v449 = vpop.permute.xlu0 %448
        %v451 = vmul.f32 %v420, %v449
        %v452 = vadd.f32 %v446, %v451
        %s453 = ssub.s32 1, %s28
        %s454 = smul.u32 %s453, %s29
        %s455 = ssub.s32 2, %s29
        %s456 = smul.u32 %s28, %s455
        %s457 = sadd.s32 %s454, %s456
        %s458 = smul.u32 %s457, 4
        %s459 = sadd.s32 %s458, %s358
        %p460 = scmp.lt.s32.totalorder %s459, 10
        %s461 = scalar_select %p460, 1, 0
        %v462 = vstv %s461
        %vm463 = vcmp.eq.s32.totalorder %v462, 1
        %v464 = vsel %vm463, %v452, %v449
        %v465 = vsel %vm463, %v452, 0.0
        %v466 = vadd.f32 %v465, 0.0
        %s467 = smul.u32 %s28, 2
        %s468 = sadd.s32 %s453, %s467
        %s469 = smul.addr %s468, 4
        %s470 = scalar_lea.vmem %s276, %s469 [#allocation3]
        %v471 = vld [vmem:[%s470] sm:$0xf]
        %v472 = vpack.c.bf16 %v464, %v464
        %474 = vrot.lane.b32.xlu0 %v472, 112
        %v475 = vpop.permute.xlu0 %474
        %v477 = vsel %vm369, %v475, 0
        %479 = vmatprep.subr.bf16.mxu0 0
        %480 = vmatpush1.bf16.msra.mxu0 %v367
        %481 = vmatprep.subr.bf16.mxu0 0
        %482 = vmatpush1.bf16.msra.mxu0 0
        %483 = vmatprep.subr.bf16.mxu0 0
        %484 = vmatpush1.bf16.msra.mxu0 0
        %485 = vmatprep.subr.bf16.mxu0 0
        %486 = vmatpush1.bf16.msra.mxu0 0
        %487 = vmatprep.subr.bf16.mxu0 0
        %488 = vmatpush1.bf16.msra.mxu0 0
        %489 = vmatprep.subr.bf16.mxu0 0
        %490 = vmatpush1.bf16.msra.mxu0 0
        %491 = vmatprep.subr.bf16.mxu0 0
        %492 = vmatpush1.bf16.msra.mxu0 0
        %493 = vmatprep.subr.bf16.mxu0 0
        %494 = vmatpush1.bf16.msra.mxu0 0
        %495 = vmatprep.subr.bf16.mxu0 0
        %496 = vmatpush1.bf16.msra.mxu0 0
        %497 = vmatprep.subr.bf16.mxu0 0
        %498 = vmatpush1.bf16.msra.mxu0 0
        %499 = vmatprep.subr.bf16.mxu0 0
        %500 = vmatpush1.bf16.msra.mxu0 0
        %501 = vmatprep.subr.bf16.mxu0 0
        %502 = vmatpush1.bf16.msra.mxu0 0
        %503 = vmatprep.subr.bf16.mxu0 0
        %504 = vmatpush1.bf16.msra.mxu0 0
        %505 = vmatprep.subr.bf16.mxu0 0
        %506 = vmatpush1.bf16.msra.mxu0 0
        %507 = vmatprep.subr.bf16.mxu0 0
        %508 = vmatpush1.bf16.msra.mxu0 0
        %509 = vmatprep.subr.bf16.mxu0 0
        %510 = vmatpush1.bf16.msra.mxu0 0
        %511 = vmatprep.mubr.bf16.mxu0 0
        %512 = vmatmul.mubr.bf16.gmra.mrb[0].mxu0 %v477
        %v513 = vpop.f32.mrb[0].mxu0
        %v514 = vadd.f32 0.0, %v513
        %v515 = vpop.f32.mrb[0].mxu0
        %v516 = vpop.f32.mrb[0].mxu0
        %v517 = vpop.f32.mrb[0].mxu0
        %518 = vdwg.mxu0
        %v519 = vunpack.c.l.bf16 %v471
        %v520 = vadd.f32 %v519, %v514
        %v521 = vxor.u32 %v520, 2147483648
        %v522 = vmul.f32 %v521, 1.442695
        %v523 = vpow.pop %v522
        %v524 = vadd.f32 %v523, 1.0
        %v525 = vrcp.pop %v524
        %v526 = vmul.f32 1.0, %v525
        %v527 = vadd.f32 %v514, %v427
        %529 = vrot.lane.b32.xlu0 %v527, 96
        %v530 = vpop.permute.xlu0 %529
        %v532 = vmul.f32 %v526, %v530
        %534 = vrot.lane.b32.xlu0 %v532, 32
        %v535 = vpop.permute.xlu0 %534
        %v537 = vadd.f32 %v519, %v535
        %v538 = vtanh.pop %v537
        %v539 = vsub.f32 1.0, %v526
        %541 = vrot.lane.b32.xlu0 %v538, 112
        %v542 = vpop.permute.xlu0 %541
        %v544 = vmul.f32 %v539, %v542
        %v545 = vmul.f32 %v526, %v464
        %v546 = vadd.f32 %v544, %v545
        %s547 = sadd.s32 %s458, %s468
        %p548 = scmp.lt.s32.totalorder %s547, 10
        %s549 = scalar_select %p548, 1, 0
        %v550 = vstv %s549
        %vm551 = vcmp.eq.s32.totalorder %v550, 1
        %v552 = vsel %vm551, %v546, %v464
        %v553 = vsel %vm551, %v546, 0.0
        %v554 = vadd.f32 %v466, %v553
        %s555 = smul.u32 %s453, 2
        %s556 = sadd.s32 %s555, %s28
        %s557 = smul.addr %s556, 4
        %s558 = scalar_lea.vmem %s276, %s557 [#allocation3]
        %v559 = vld [vmem:[%s558] sm:$0xf]
        %v560 = vpack.c.bf16 %v552, %v552
        %562 = vrot.lane.b32.xlu0 %v560, 112
        %v563 = vpop.permute.xlu0 %562
        %v565 = vsel %vm369, %v563, 0
        %567 = vmatprep.subr.bf16.mxu0 0
        %568 = vmatpush1.bf16.msra.mxu0 %v367
        %569 = vmatprep.subr.bf16.mxu0 0
        %570 = vmatpush1.bf16.msra.mxu0 0
        %571 = vmatprep.subr.bf16.mxu0 0
        %572 = vmatpush1.bf16.msra.mxu0 0
        %573 = vmatprep.subr.bf16.mxu0 0
        %574 = vmatpush1.bf16.msra.mxu0 0
        %575 = vmatprep.subr.bf16.mxu0 0
        %576 = vmatpush1.bf16.msra.mxu0 0
        %577 = vmatprep.subr.bf16.mxu0 0
        %578 = vmatpush1.bf16.msra.mxu0 0
        %579 = vmatprep.subr.bf16.mxu0 0
        %580 = vmatpush1.bf16.msra.mxu0 0
        %581 = vmatprep.subr.bf16.mxu0 0
        %582 = vmatpush1.bf16.msra.mxu0 0
        %583 = vmatprep.subr.bf16.mxu0 0
        %584 = vmatpush1.bf16.msra.mxu0 0
        %585 = vmatprep.subr.bf16.mxu0 0
        %586 = vmatpush1.bf16.msra.mxu0 0
        %587 = vmatprep.subr.bf16.mxu0 0
        %588 = vmatpush1.bf16.msra.mxu0 0
        %589 = vmatprep.subr.bf16.mxu0 0
        %590 = vmatpush1.bf16.msra.mxu0 0
        %591 = vmatprep.subr.bf16.mxu0 0
        %592 = vmatpush1.bf16.msra.mxu0 0
        %593 = vmatprep.subr.bf16.mxu0 0
        %594 = vmatpush1.bf16.msra.mxu0 0
        %595 = vmatprep.subr.bf16.mxu0 0
        %596 = vmatpush1.bf16.msra.mxu0 0
        %597 = vmatprep.subr.bf16.mxu0 0
        %598 = vmatpush1.bf16.msra.mxu0 0
        %599 = vmatprep.mubr.bf16.mxu0 0
        %600 = vmatmul.mubr.bf16.gmra.mrb[0].mxu0 %v565
        %v601 = vpop.f32.mrb[0].mxu0
        %v602 = vadd.f32 0.0, %v601
        %v603 = vpop.f32.mrb[0].mxu0
        %v604 = vpop.f32.mrb[0].mxu0
        %v605 = vpop.f32.mrb[0].mxu0
        %606 = vdwg.mxu0
        %v607 = vunpack.c.l.bf16 %v559
        %v608 = vadd.f32 %v607, %v602
        %v609 = vxor.u32 %v608, 2147483648
        %v610 = vmul.f32 %v609, 1.442695
        %v611 = vpow.pop %v610
        %v612 = vadd.f32 %v611, 1.0
        %v613 = vrcp.pop %v612
        %v614 = vmul.f32 1.0, %v613
        %v615 = vadd.f32 %v602, %v427
        %617 = vrot.lane.b32.xlu0 %v615, 96
        %v618 = vpop.permute.xlu0 %617
        %v620 = vmul.f32 %v614, %v618
        %622 = vrot.lane.b32.xlu0 %v620, 32
        %v623 = vpop.permute.xlu0 %622
        %v625 = vadd.f32 %v607, %v623
        %v626 = vtanh.pop %v625
        %v627 = vsub.f32 1.0, %v614
        %629 = vrot.lane.b32.xlu0 %v626, 112
        %v630 = vpop.permute.xlu0 %629
        %v632 = vmul.f32 %v627, %v630
        %v633 = vmul.f32 %v614, %v552
        %v634 = vadd.f32 %v632, %v633
        %s635 = sadd.s32 %s458, %s556
        %p636 = scmp.lt.s32.totalorder %s635, 10
        %s637 = scalar_select %p636, 1, 0
        %v638 = vstv %s637
        %vm639 = vcmp.eq.s32.totalorder %v638, 1
        %v640 = vsel %vm639, %v634, %v552
        %v641 = vsel %vm639, %v634, 0.0
        %v642 = vadd.f32 %v554, %v641
        %s643 = smul.u32 %s453, 3
        %s644 = smul.addr %s643, 4
        %s645 = scalar_lea.vmem %s276, %s644 [#allocation3]
        %v646 = vld [vmem:[%s645] sm:$0xf]
        %v647 = vpack.c.bf16 %v640, %v640
        %649 = vrot.lane.b32.xlu0 %v647, 112
        %v650 = vpop.permute.xlu0 %649
        %v652 = vsel %vm369, %v650, 0
        %654 = vmatprep.subr.bf16.mxu0 0
        %655 = vmatpush1.bf16.msra.mxu0 %v367
        %656 = vmatprep.subr.bf16.mxu0 0
        %657 = vmatpush1.bf16.msra.mxu0 0
        %658 = vmatprep.subr.bf16.mxu0 0
        %659 = vmatpush1.bf16.msra.mxu0 0
        %660 = vmatprep.subr.bf16.mxu0 0
        %661 = vmatpush1.bf16.msra.mxu0 0
        %662 = vmatprep.subr.bf16.mxu0 0
        %663 = vmatpush1.bf16.msra.mxu0 0
        %664 = vmatprep.subr.bf16.mxu0 0
        %665 = vmatpush1.bf16.msra.mxu0 0
        %666 = vmatprep.subr.bf16.mxu0 0
        %667 = vmatpush1.bf16.msra.mxu0 0
        %668 = vmatprep.subr.bf16.mxu0 0
        %669 = vmatpush1.bf16.msra.mxu0 0
        %670 = vmatprep.subr.bf16.mxu0 0
        %671 = vmatpush1.bf16.msra.mxu0 0
        %672 = vmatprep.subr.bf16.mxu0 0
        %673 = vmatpush1.bf16.msra.mxu0 0
        %674 = vmatprep.subr.bf16.mxu0 0
        %675 = vmatpush1.bf16.msra.mxu0 0
        %676 = vmatprep.subr.bf16.mxu0 0
        %677 = vmatpush1.bf16.msra.mxu0 0
        %678 = vmatprep.subr.bf16.mxu0 0
        %679 = vmatpush1.bf16.msra.mxu0 0
        %680 = vmatprep.subr.bf16.mxu0 0
        %681 = vmatpush1.bf16.msra.mxu0 0
        %682 = vmatprep.subr.bf16.mxu0 0
        %683 = vmatpush1.bf16.msra.mxu0 0
        %684 = vmatprep.subr.bf16.mxu0 0
        %685 = vmatpush1.bf16.msra.mxu0 0
        %686 = vmatprep.mubr.bf16.mxu0 0
        %687 = vmatmul.mubr.bf16.gmra.mrb[0].mxu0 %v652
        %v688 = vpop.f32.mrb[0].mxu0
        %v689 = vadd.f32 0.0, %v688
        %v690 = vpop.f32.mrb[0].mxu0
        %v691 = vpop.f32.mrb[0].mxu0
        %v692 = vpop.f32.mrb[0].mxu0
        %693 = vdwg.mxu0
        %v694 = vunpack.c.l.bf16 %v646
        %v695 = vadd.f32 %v694, %v689
        %v696 = vxor.u32 %v695, 2147483648
        %v697 = vmul.f32 %v696, 1.442695
        %v698 = vpow.pop %v697
        %v699 = vadd.f32 %v698, 1.0
        %v700 = vrcp.pop %v699
        %v701 = vmul.f32 1.0, %v700
        %v702 = vadd.f32 %v689, %v427
        %704 = vrot.lane.b32.xlu0 %v702, 96
        %v705 = vpop.permute.xlu0 %704
        %v707 = vmul.f32 %v701, %v705
        %709 = vrot.lane.b32.xlu0 %v707, 32
        %v710 = vpop.permute.xlu0 %709
        %v712 = vadd.f32 %v694, %v710
        %v713 = vtanh.pop %v712
        %v714 = vsub.f32 1.0, %v701
        %716 = vrot.lane.b32.xlu0 %v713, 112
        %v717 = vpop.permute.xlu0 %716
        %v719 = vmul.f32 %v714, %v717
        %v720 = vmul.f32 %v701, %v640
        %v721 = vadd.f32 %v719, %v720
        %s722 = sadd.s32 %s458, %s643
        %p723 = scmp.lt.s32.totalorder %s722, 10
        %s724 = scalar_select %p723, 1, 0
        %v725 = vstv %s724
        %vm726 = vcmp.eq.s32.totalorder %v725, 1
        %v727 = vsel %vm726, %v721, %v640
        %v728 = vsel %vm726, %v721, 0.0
        %v729 = vadd.f32 %v642, %v728
        %731 = vrot.lane.b32.xlu0 %v727, 112
        %v732 = vpop.permute.xlu0 %731
        %734 = vst.msk [vmem:[%s356] sm:$0xff] %vm369, %v732
        %v735 = vld [vmem:[%s331] sm:$0xff]
        %737 = vrot.lane.b32.xlu0 %v729, 112
        %v738 = vpop.permute.xlu0 %737
        %v740 = vadd.f32 %v735, %v738
        %741 = vst.msk [vmem:[%s331] sm:$0xff] %vm369, %v740
        %s742 = sand.u32 %s160, 1
        %s743 = scalar_lea.sflag [#allocation5], %s742
        %s744 = sand.u32 %s160, 1
        %s745 = smul.addr %s744, 8
        %s746 = scalar_lea.vmem [#allocation9], %s745
        // Predicated region
        $region53: #{tpu_custom_call.1} parent=35 // pred_check
          %p747 = pneg %p170
        $region54: #{tpu_custom_call.1} parent=35 // pred_check_branch
          %749 = sbr.rel (%p747) target = $region56
        $region55: #{tpu_custom_call.1} parent=35 // pred_region
          %s751 = ssub.s32 128, 128
          %752 = vsyncadd %s743, %s751
          %s753 = smul.addr %s28, 128
          %s754 = scalar_lea.hbm %s4, %s753
          %s756 = sshll.u32 %s746, 4
          %s757 = int_to_ptr.vmem [resolvable:$true] %s756
          %759 = dma.vmem_to_hbm [thread:$0]  %s757, 128, %s754, %s743
        $region56: #{tpu_custom_call.1} parent=35 // pred_fallthru
          _
      $region36: #{tpu_custom_call.1} parent=5 // pred_fallthru
        _
      %p760 = scmp.le.s32.totalorder 2, %s19
      // Predicated region
      $region57: #{tpu_custom_call.1} parent=5 // pred_check
        %p761 = pneg %p760
      $region58: #{tpu_custom_call.1} parent=5 // pred_check_branch
        %763 = sbr.rel (%p761) target = $region60
      $region59: #{tpu_custom_call.1} parent=5 // pred_region
        %s764 = ssub.s32 %s19, 2
        // Predicated region
        $region61: #{tpu_custom_call.1} parent=59 // pred_check
          %p765 = pneg %p176
        $region62: #{tpu_custom_call.1} parent=59 // pred_check_branch
          %767 = sbr.rel (%p765) target = $region64
        $region63: #{tpu_custom_call.1} parent=59 // pred_region
          %s768 = sand.u32 %s161, 1
          %s769 = scalar_lea.sflag [#allocation5], %s768
          %s770 = sand.u32 %s161, 1
          %s771 = smul.addr %s770, 8
          %s772 = scalar_lea.vmem [#allocation9], %s771
          %773 = dma.done %s769, 128
        $region64: #{tpu_custom_call.1} parent=59 // pred_fallthru
          _
      $region60: #{tpu_custom_call.1} parent=5 // pred_fallthru
        _
    $region6: #{tpu_custom_call.1} parent=1 // loop_footer
      %s23 = sadd.s32 1, %s19
    $region7: #{tpu_custom_call.1} parent=1 // loop_footer_branch
      %18 = sbr.rel target = $region3
    $region8: #{tpu_custom_call.1} parent=1 // loop_exit
      _
    %774 = vsyncpa [#allocation4], 1
    %s775 = scalar_lea.sflag [#allocation4], 1
    %776 = vsyncpa %s775, 1
    %777 = vsyncpa [#allocation7], 1
    %s778 = scalar_lea.sflag [#allocation7], 1
    %779 = vsyncpa %s778, 1
    %780 = vsyncpa [#allocation5], 1
    %s781 = scalar_lea.sflag [#allocation5], 1
    %782 = vsyncpa %s781, 1

</llo_original>
